<compile_context>
chip_gen: v6e
topology: v6e:2x2x1
jax: 0.10.0
libtpu: 0.0.40
codegen_flags: <defaults>
</compile_context>

<pallas_src>
import math

import jax
import jax.numpy as jnp
from jax.experimental import pallas as pl
from jax.experimental.pallas import tpu as pltpu


# ----------------------------------------------------------------------------
# Config (small, consistent with the PyTorch module's semantics)
# ----------------------------------------------------------------------------
IMAGE_SIZE = 16
PATCH_SIZE = 4
ENCODER_STRIDE = 4          # == PATCH_SIZE -> non-overlapping patches
NUM_CHANNELS = 3
EMBEDDED_SIZE = 32
BATCH = 2

H_FEAT = (IMAGE_SIZE - PATCH_SIZE) // ENCODER_STRIDE + 1   # conv2d output dims
W_FEAT = (IMAGE_SIZE - PATCH_SIZE) // ENCODER_STRIDE + 1
SEQ_LEN = H_FEAT * W_FEAT                                  # 16
PATCH_DIM = NUM_CHANNELS * PATCH_SIZE * PATCH_SIZE         # 48

LANE = 128
E_PAD = ((EMBEDDED_SIZE + LANE - 1) // LANE) * LANE        # lane-dense N (128)


# ----------------------------------------------------------------------------
# Sinusoidal positional encoding (standard transformer PE)
# ----------------------------------------------------------------------------
def sinusoidal_positional_encoding(seq_len: int, dim: int) -> jnp.ndarray:
    pos = jnp.arange(seq_len, dtype=jnp.float32)[:, None]            # (S, 1)
    i = jnp.arange(dim // 2, dtype=jnp.float32)[None, :]             # (1, D/2)
    angle = pos / jnp.power(10000.0, (2.0 * i) / dim)                # (S, D/2)
    pe = jnp.zeros((seq_len, dim), dtype=jnp.float32)
    pe = pe.at[:, 0::2].set(jnp.sin(angle))
    pe = pe.at[:, 1::2].set(jnp.cos(angle))
    return pe[None]                                                  # (1, S, D)


# ----------------------------------------------------------------------------
# Pallas kernel: per-batch patch projection + fused (cls | pos+bias) add
# ----------------------------------------------------------------------------
def patch_encoder_kernel(p_ref, w_ref, add_ref, o_ref):
    # p_ref  : (1, S, K)      bf16 flattened patches of ONE batch element.
    # w_ref  : (K, E_PAD)     bf16 projection weight (Conv2d weight, zero-
    #                         padded to a lane-dense 128-wide N). Resident.
    # add_ref: (S+1, E_PAD)   f32 additive table: row 0 = cls_token,
    #                         rows 1.. = pos_embed + conv bias. Resident.
    # o_ref  : (1, S+1, E_PAD) f32 final embeddings for this batch element.
    y = jnp.dot(p_ref[0], w_ref[...],
                preferred_element_type=jnp.float32)       # (S, E_PAD) f32, MXU
    o_ref[0, 0:1, :] = add_ref[0:1, :]                    # CLS row (no pos emb)
    o_ref[0, 1:, :] = y + add_ref[1:, :]                  # patches + pos + bias


def patch_encode(patches, w_pad, add_pad):
    """patches: (B, S, K) bf16; w_pad: (K, E_PAD) bf16; add_pad: (S+1, E_PAD) f32
    -> (B, S+1, E_PAD) f32."""
    B, S, K = patches.shape
    Ep = w_pad.shape[1]
    return pl.pallas_call(
        patch_encoder_kernel,
        out_shape=jax.ShapeDtypeStruct((B, S + 1, Ep), jnp.float32),
        grid_spec=pltpu.PrefetchScalarGridSpec(
            num_scalar_prefetch=0,
            grid=(B,),
            in_specs=[
                # one batch element's patch rows per grid step
                pl.BlockSpec((1, S, K), lambda b: (b, 0, 0)),
                # weight: same block every step -> DMA'd once, VMEM-resident
                pl.BlockSpec((K, Ep), lambda b: (0, 0)),
                # single shared add table: same block every step (no jnp.tile)
                pl.BlockSpec((S + 1, Ep), lambda b: (0, 0)),
            ],
            out_specs=pl.BlockSpec((1, S + 1, Ep), lambda b: (b, 0, 0)),
        ),
        compiler_params=pltpu.CompilerParams(
            # batch/row axis is independent -> shard across TCs on v7x
            dimension_semantics=("parallel",),
            # explicit budget; safe on v5e/v6e (128 MiB) and v7x (64 MiB phys)
            vmem_limit_bytes=32 * 1024 * 1024,
        ),
    )(patches, w_pad, add_pad)


# ----------------------------------------------------------------------------
# One-time parameter prep (hoisted out of the per-call path)
# ----------------------------------------------------------------------------
def prepare_params(conv_weight, conv_bias, cls_token, pos_embed):
    """Returns (w_pad, add_pad) used by the kernel.

    w_pad   : (K, E_PAD)   bf16 Conv2d weight flattened, transposed, zero-
                           padded to a lane-dense 128-wide output dim.
    add_pad : (S+1, E_PAD) f32; row 0 = cls_token, rows 1.. = pos_embed + bias,
                           zero-padded columns beyond E.
    """
    E, C, P, _ = conv_weight.shape
    K = C * P * P
    S = pos_embed.shape[1]

    w2d = conv_weight.reshape(E, K).T                          # (K, E) f32
    w_pad = jnp.zeros((K, E_PAD), jnp.bfloat16)
    w_pad = w_pad.at[:, :E].set(w2d.astype(jnp.bfloat16))

    patch_add = pos_embed[0] + conv_bias[None, :]              # (S, E)
    cls_row = cls_token.reshape(1, E)                          # (1, E)
    table = jnp.concatenate([cls_row, patch_add], axis=0)      # (S+1, E)
    add_pad = jnp.zeros((S + 1, E_PAD), jnp.float32)
    add_pad = add_pad.at[:, :E].set(table)
    return w_pad, add_pad


# ----------------------------------------------------------------------------
# Forward (glue in JAX — fused by jit — hot path in Pallas)
# ----------------------------------------------------------------------------
@jax.jit
def vit_patch_encoder_forward(images, w_pad, add_pad):
    """images: (B, C, H, W) NCHW; returns (B, S+1, E) with CLS at seq 0."""
    B, C, H, W = images.shape
    P = PATCH_SIZE
    Hf, Wf = H // P, W // P
    S = Hf * Wf
    K = C * P * P

    # Conv2d(kernel=stride=P) input unroll (single fused XLA copy):
    # (B, C, Hf, P, Wf, P) -> (B, Hf, Wf, C, P, P) -> (B, S, C*P*P)
    patches = images.reshape(B, C, Hf, P, Wf, P)
    patches = patches.transpose(0, 2, 4, 1, 3, 5).reshape(B, S, K)
    patches = patches.astype(jnp.bfloat16)                    # MXU bf16 path

    out_pad = patch_encode(patches, w_pad, add_pad)            # (B, S+1, E_PAD)
    return out_pad[..., :EMBEDDED_SIZE]                        # drop lane pad

    # TODO(synk): config.interpolation (bilinear F.interpolate) path not
    # implemented — config default is interpolation=False.


# ----------------------------------------------------------------------------
# Reference (pure JAX, f32, HIGHEST precision) for sanity-check
# ----------------------------------------------------------------------------
def reference_forward(images, conv_weight, conv_bias, cls_token, pos_embed):
    B = images.shape[0]
    out = jax.lax.conv_general_dilated(
        images, conv_weight,
        window_strides=(ENCODER_STRIDE, ENCODER_STRIDE),
        padding="VALID",
        dimension_numbers=("NCHW", "OIHW", "NCHW"),
        precision=jax.lax.Precision.HIGHEST)                    # (B,E,Hf,Wf)
    out = out + conv_bias[None, :, None, None]
    out = out.reshape(B, EMBEDDED_SIZE, -1).transpose(0, 2, 1)  # (B,S,E)
    out = out + pos_embed
    cls = jnp.broadcast_to(cls_token, (B, 1, EMBEDDED_SIZE))
    return jnp.concatenate([cls, out], axis=1)


if __name__ == "__main__":
    key = jax.random.PRNGKey(0)
    k_img, k_w, k_b, k_cls = jax.random.split(key, 4)

    images = jax.random.normal(
        k_img, (BATCH, NUM_CHANNELS, IMAGE_SIZE, IMAGE_SIZE), jnp.float32)

    # Deterministic parameter init (shapes from nn.Conv2d / nn.Parameter).
    conv_weight = jax.random.normal(
        k_w, (EMBEDDED_SIZE, NUM_CHANNELS, PATCH_SIZE, PATCH_SIZE),
        jnp.float32) * (1.0 / math.sqrt(PATCH_DIM))
    conv_bias = jax.random.normal(k_b, (EMBEDDED_SIZE,), jnp.float32) * 0.01
    cls_token = jax.random.normal(k_cls, (1, 1, EMBEDDED_SIZE), jnp.float32)
    pos_embed = sinusoidal_positional_encoding(SEQ_LEN, EMBEDDED_SIZE)

    # One-time parameter prep (lane-padded bf16 weight + fused add table).
    w_pad, add_pad = prepare_params(conv_weight, conv_bias, cls_token,
                                    pos_embed)

    out = vit_patch_encoder_forward(images, w_pad, add_pad)
    out = jax.block_until_ready(out)

    ref = reference_forward(images, conv_weight, conv_bias, cls_token,
                            pos_embed)
    assert out.shape == (BATCH, SEQ_LEN + 1, EMBEDDED_SIZE), out.shape
    # bf16 MXU inputs with f32 accumulation vs f32 HIGHEST reference.
    max_err = float(jnp.max(jnp.abs(out - ref)))
    assert max_err < 5e-2, max_err

    print("KERNEL_OK")
</pallas_src>

<mosaic_0001>
module attributes {stable_mosaic.version = 11 : i64} {
  func.func @patch_encoder_kernel(%arg0: i32, %arg1: memref<1x16x48xbf16, #tpu.memory_space<vmem>>, %arg2: memref<48x128xbf16, #tpu.memory_space<vmem>>, %arg3: memref<17x128xf32, #tpu.memory_space<vmem>>, %arg4: memref<1x17x128xf32, #tpu.memory_space<vmem>>) attributes {dimension_semantics = [#tpu.dimension_semantics<parallel>], iteration_bounds = array<i64: 2>, scalar_prefetch = 0 : i64, scratch_operands = 0 : i64, tpu.core_type = #tpu.core_type<tc>, window_params = [{transform_indices = @transform_0, window_bounds = array<i64: 1, 16, 48>}, {pipeline_mode = #tpu.pipeline_mode<synchronous>, transform_indices = @transform_1, window_bounds = array<i64: 48, 128>}, {pipeline_mode = #tpu.pipeline_mode<synchronous>, transform_indices = @transform_2, window_bounds = array<i64: 17, 128>}, {transform_indices = @transform_3, window_bounds = array<i64: 1, 17, 128>}]} {
    %c0 = arith.constant 0 : index
    %c0_0 = arith.constant 0 : index
    %c0_1 = arith.constant 0 : index
    %0 = vector.load %arg1[%c0, %c0_0, %c0_1] : memref<1x16x48xbf16, #tpu.memory_space<vmem>>, vector<1x16x48xbf16>
    %1 = vector.shape_cast %0 : vector<1x16x48xbf16> to vector<16x48xbf16>
    %c0_2 = arith.constant 0 : index
    %c0_3 = arith.constant 0 : index
    %2 = vector.load %arg2[%c0_2, %c0_3] : memref<48x128xbf16, #tpu.memory_space<vmem>>, vector<48x128xbf16>
    %cst = arith.constant dense<0.000000e+00> : vector<16x128xf32>
    %3 = tpu.matmul %1, %2, %cst {dimension_numbers = #tpu.dot_dimension_numbers<[1], [0], [0], [1], [0, 0, 1, 1], [], []>} : vector<16x48xbf16>, vector<48x128xbf16>, vector<16x128xf32> -> vector<16x128xf32>
    %c0_4 = arith.constant 0 : index
    %c0_5 = arith.constant 0 : index
    %4 = vector.load %arg3[%c0_4, %c0_5] : memref<17x128xf32, #tpu.memory_space<vmem>>, vector<1x128xf32>
    %c0_6 = arith.constant 0 : index
    %c0_7 = arith.constant 0 : index
    %c0_8 = arith.constant 0 : index
    %5 = vector.load %arg4[%c0_6, %c0_7, %c0_8] : memref<1x17x128xf32, #tpu.memory_space<vmem>>, vector<1x1x128xf32>
    %6 = vector.shape_cast %5 : vector<1x1x128xf32> to vector<1x128xf32>
    %7 = vector.shape_cast %4 : vector<1x128xf32> to vector<1x1x128xf32>
    tpu.vector_store %arg4[%c0_6, %c0_7, %c0_8], %7 {strides = array<i32>} : memref<1x17x128xf32, #tpu.memory_space<vmem>>, vector<1x1x128xf32>,
    %c1 = arith.constant 1 : index
    %c0_9 = arith.constant 0 : index
    %8 = vector.load %arg3[%c1, %c0_9] : memref<17x128xf32, #tpu.memory_space<vmem>>, vector<16x128xf32>
    %9 = arith.addf %3, %8 : vector<16x128xf32>
    %c0_10 = arith.constant 0 : index
    %c1_11 = arith.constant 1 : index
    %c0_12 = arith.constant 0 : index
    %10 = vector.load %arg4[%c0_10, %c1_11, %c0_12] : memref<1x17x128xf32, #tpu.memory_space<vmem>>, vector<1x16x128xf32>
    %11 = vector.shape_cast %10 : vector<1x16x128xf32> to vector<16x128xf32>
    %12 = vector.shape_cast %9 : vector<16x128xf32> to vector<1x16x128xf32>
    tpu.vector_store %arg4[%c0_10, %c1_11, %c0_12], %12 {strides = array<i32>} : memref<1x17x128xf32, #tpu.memory_space<vmem>>, vector<1x16x128xf32>,
    return
  }
  func.func @transform_0(%arg0: i32) -> (i32, i32, i32) {
    %c0_i32 = arith.constant 0 : i32
    %c0_i32_0 = arith.constant 0 : i32
    %c0_i32_1 = arith.constant 0 : i32
    return %arg0, %c0_i32, %c0_i32_0 : i32, i32, i32
  }
  func.func @transform_1(%arg0: i32) -> (i32, i32) {
    %c0_i32 = arith.constant 0 : i32
    %c0_i32_0 = arith.constant 0 : i32
    %c0_i32_1 = arith.constant 0 : i32
    return %c0_i32, %c0_i32_0 : i32, i32
  }
  func.func @transform_2(%arg0: i32) -> (i32, i32) {
    %c0_i32 = arith.constant 0 : i32
    %c0_i32_0 = arith.constant 0 : i32
    %c0_i32_1 = arith.constant 0 : i32
    return %c0_i32, %c0_i32_0 : i32, i32
  }
  func.func @transform_3(%arg0: i32) -> (i32, i32, i32) {
    %c0_i32 = arith.constant 0 : i32
    %c0_i32_0 = arith.constant 0 : i32
    %c0_i32_1 = arith.constant 0 : i32
    return %arg0, %c0_i32, %c0_i32_0 : i32, i32, i32
  }
}

</mosaic_0001>

<llo_original>
// kernel: vit_patch_encoder_forward.1
$region0: #{vit_patch_encoder_forward.1}
  #allocation0 [shape = 'u32[]', space=smem, size = 0x4, offset = 0x4, fixed_abs, tag = 'smem constant byte address 0x4 - core index']
  #allocation1 [shape = 'u32[144,128]{1,0:T(1,128)}', space=vmem, size = 0x12000, scoped, tag = 'internal scratch']
  %s0 = inlined_call_operand.vmem [shape: bf16[2,16,48], index: 0, kind: input, shape index: {}]
  %s1 = inlined_call_operand.vmem [shape: bf16[48,128], index: 1, kind: input, shape index: {}]
  %s2 = inlined_call_operand.vmem [shape: f32[17,128], index: 2, kind: input, shape index: {}]
  %s3 = inlined_call_operand.vmem [shape: f32[2,17,128], index: 3, kind: output, shape index: {}]
  %s4 = sld [smem:[#allocation0]]
  $region45: #{vit_patch_encoder_forward.1} parent=0
    _
  %s6 = ssub.s32 1, %s4
  %s7 = scalar_select 0, %s6, %s4
  loop: start=0, step=1, limit=4
  $region2: #{vit_patch_encoder_forward.1} parent=0 // loop_pre_header
    _
  $region3: #{vit_patch_encoder_forward.1} parent=0 // loop_header
    %s9 = sphi 0, %s13
    %p10 = scmp.ge.s32.totalorder %s9, 4
    %s19 = sphi 0, %s21
    %s22 = sphi 0, %s19
    %s23 = sphi 0, %s22
    %s39 = sphi 0, %s23
    %s43 = sphi 0, %s43
    %s45 = sphi 0, %s43
    %s46 = sphi 0, %s45
    %s60 = sphi 0, %s46
    %s64 = sphi 0, %s64
    %s66 = sphi 0, %s64
    %s67 = sphi 0, %s66
    %s81 = sphi 0, %s67
    %s87 = sphi 0, %s89
    %s90 = sphi 0, %s87
    %s91 = sphi 0, %s90
    %s107 = sphi 0, %s91
  $region4: #{vit_patch_encoder_forward.1} parent=0 // loop_header_branch
    %12 = sbr.rel (%p10) target = $region8
  $region5: #{vit_patch_encoder_forward.1} parent=0 // loop_body
    %s14 = ssub.s32 %s9, 1
    %s15 = ssub.s32 %s9, 2
    %s16 = sadd.s32 %s9, 1
    %s17 = ssub.s32 %s9, %s16
    %p18 = scmp.eq.s32.totalorder %s17, 0
    %s20 = sadd.s32 %s19, 1
    %s21 = scalar_select %p18, %s19, %s20
    %p24 = pneg %p18
    %p25 = scmp.eq.s32.totalorder %s9, 1
    %p26 = por %p24, %p25
    %p27 = scmp.ne.s32.totalorder %s19, %s22
    %p28 = scmp.eq.s32.totalorder %s9, 0
    %p29 = por %p27, %p28
    %p30 = scmp.ne.s32.totalorder %s19, %s22
    %p31 = scmp.eq.s32.totalorder %s14, 1
    %p32 = por %p30, %p31
    %p33 = scmp.ne.s32.totalorder %s22, %s23
    %p34 = scmp.eq.s32.totalorder %s14, 0
    %p35 = por %p33, %p34
    %p36 = scmp.ne.s32.totalorder %s22, %s23
    %p37 = scmp.eq.s32.totalorder %s15, 1
    %p38 = por %p36, %p37
    %p40 = scmp.ne.s32.totalorder %s23, %s39
    %p41 = scmp.eq.s32.totalorder %s15, 0
    %p42 = por %p40, %p41
    %s44 = sadd.s32 %s43, 1
    %p47 = scmp.eq.s32.totalorder %s9, 1
    %p48 = scmp.ne.s32.totalorder %s43, %s45
    %p49 = scmp.eq.s32.totalorder %s9, 0
    %p50 = por %p48, %p49
    %p51 = scmp.ne.s32.totalorder %s43, %s45
    %p52 = scmp.eq.s32.totalorder %s14, 1
    %p53 = por %p51, %p52
    %p54 = scmp.ne.s32.totalorder %s45, %s46
    %p55 = scmp.eq.s32.totalorder %s14, 0
    %p56 = por %p54, %p55
    %p57 = scmp.ne.s32.totalorder %s45, %s46
    %p58 = scmp.eq.s32.totalorder %s15, 1
    %p59 = por %p57, %p58
    %p61 = scmp.ne.s32.totalorder %s46, %s60
    %p62 = scmp.eq.s32.totalorder %s15, 0
    %p63 = por %p61, %p62
    %s65 = sadd.s32 %s64, 1
    %p68 = scmp.eq.s32.totalorder %s9, 1
    %p69 = scmp.ne.s32.totalorder %s64, %s66
    %p70 = scmp.eq.s32.totalorder %s9, 0
    %p71 = por %p69, %p70
    %p72 = scmp.ne.s32.totalorder %s64, %s66
    %p73 = scmp.eq.s32.totalorder %s14, 1
    %p74 = por %p72, %p73
    %p75 = scmp.ne.s32.totalorder %s66, %s67
    %p76 = scmp.eq.s32.totalorder %s14, 0
    %p77 = por %p75, %p76
    %p78 = scmp.ne.s32.totalorder %s66, %s67
    %p79 = scmp.eq.s32.totalorder %s15, 1
    %p80 = por %p78, %p79
    %p82 = scmp.ne.s32.totalorder %s67, %s81
    %p83 = scmp.eq.s32.totalorder %s15, 0
    %p84 = por %p82, %p83
    %s85 = ssub.s32 %s9, %s16
    %p86 = scmp.eq.s32.totalorder %s85, 0
    %s88 = sadd.s32 %s87, 1
    %s89 = scalar_select %p86, %s87, %s88
    %p92 = pneg %p86
    %p93 = scmp.eq.s32.totalorder %s9, 1
    %p94 = por %p92, %p93
    %p95 = scmp.ne.s32.totalorder %s87, %s90
    %p96 = scmp.eq.s32.totalorder %s9, 0
    %p97 = por %p95, %p96
    %p98 = scmp.ne.s32.totalorder %s87, %s90
    %p99 = scmp.eq.s32.totalorder %s14, 1
    %p100 = por %p98, %p99
    %p101 = scmp.ne.s32.totalorder %s90, %s91
    %p102 = scmp.eq.s32.totalorder %s14, 0
    %p103 = por %p101, %p102
    %p104 = scmp.ne.s32.totalorder %s90, %s91
    %p105 = scmp.eq.s32.totalorder %s15, 1
    %p106 = por %p104, %p105
    %p108 = scmp.ne.s32.totalorder %s91, %s107
    %p109 = scmp.eq.s32.totalorder %s15, 0
    %p110 = por %p108, %p109
    %p111 = scmp.le.s32.totalorder 1, %s9
    %p112 = scmp.lt.s32.totalorder %s9, 3
    %p113 = pnand %p111, %p112
    %p114 = pneg %p113
    // Predicated region
    $region9: #{vit_patch_encoder_forward.1} parent=5 // pred_check
      _
    $region10: #{vit_patch_encoder_forward.1} parent=5 // pred_check_branch
      %116 = sbr.rel (%p113) target = $region12
    $region11: #{vit_patch_encoder_forward.1} parent=5 // pred_region
      %s117 = ssub.s32 %s9, 1
      // Predicated region
      $region13: #{vit_patch_encoder_forward.1} parent=11 // pred_check
        %p118 = pneg %p56
      $region14: #{vit_patch_encoder_forward.1} parent=11 // pred_check_branch
        %120 = sbr.rel (%p118) target = $region16
      $region15: #{vit_patch_encoder_forward.1} parent=11 // pred_region
        _
      $region16: #{vit_patch_encoder_forward.1} parent=11 // pred_fallthru
        _
      // Predicated region
      $region17: #{vit_patch_encoder_forward.1} parent=11 // pred_check
        %p121 = pneg %p77
      $region18: #{vit_patch_encoder_forward.1} parent=11 // pred_check_branch
        %123 = sbr.rel (%p121) target = $region20
      $region19: #{vit_patch_encoder_forward.1} parent=11 // pred_region
        _
      $region20: #{vit_patch_encoder_forward.1} parent=11 // pred_fallthru
        _
    $region12: #{vit_patch_encoder_forward.1} parent=5 // pred_fallthru
      _
    %p124 = scmp.lt.s32.totalorder %s9, 2
    // Predicated region
    $region21: #{vit_patch_encoder_forward.1} parent=5 // pred_check
      %p125 = pneg %p124
    $region22: #{vit_patch_encoder_forward.1} parent=5 // pred_check_branch
      %127 = sbr.rel (%p125) target = $region24
    $region23: #{vit_patch_encoder_forward.1} parent=5 // pred_region
      // Predicated region
      $region25: #{vit_patch_encoder_forward.1} parent=23 // pred_check
        %p128 = pneg %p29
      $region26: #{vit_patch_encoder_forward.1} parent=23 // pred_check_branch
        %130 = sbr.rel (%p128) target = $region28
      $region27: #{vit_patch_encoder_forward.1} parent=23 // pred_region
        %p131 = scmp.lt.s32.totalorder %s9, 1
        %s132 = scalar_select %p131, %s9, 1
        %s133 = smul.addr %s132, 2
        %s134 = smul.addr %s133, 4
        %s135 = scalar_lea.vmem %s0, %s134
      $region28: #{vit_patch_encoder_forward.1} parent=23 // pred_fallthru
        _
    $region24: #{vit_patch_encoder_forward.1} parent=5 // pred_fallthru
      _
    %p136 = scmp.le.s32.totalorder 1, %s9
    %p137 = scmp.lt.s32.totalorder %s9, 3
    %p138 = pnand %p136, %p137
    %p139 = pneg %p138
    // Predicated region
    $region29: #{vit_patch_encoder_forward.1} parent=5 // pred_check
      _
    $region30: #{vit_patch_encoder_forward.1} parent=5 // pred_check_branch
      %141 = sbr.rel (%p138) target = $region32
    $region31: #{vit_patch_encoder_forward.1} parent=5 // pred_region
      %s142 = ssub.s32 %s9, 1
      %p143 = scmp.lt.s32.totalorder %s14, 1
      %s144 = scalar_select %p143, %s14, 1
      %s145 = smul.addr %s144, 2
      %s146 = smul.addr %s145, 4
      %s147 = scalar_lea.vmem %s0, %s146
      %p148 = pneg %p35
      %p149 = pneg %p32
      %p150 = pneg %p56
      %p151 = pneg %p53
      %p152 = pneg %p77
      %p153 = pneg %p74
      %p154 = pneg %p103
      %p155 = pneg %p100
      %p156 = scmp.lt.s32.totalorder %s14, 1
      %s157 = scalar_select %p156, %s14, 1
      %s158 = smul.addr %s157, 3
      %s159 = smul.addr %s158, 8
      %s160 = scalar_lea.vmem %s3, %s159
      %p161 = scmp.lt.s32.totalorder %s14, 1
      %s162 = scalar_select %p161, %s14, 1
      %s163 = smul.addr %s162, 2
      %s164 = smul.addr %s163, 4
      %s165 = scalar_lea.vmem %s0, %s164
      %p166 = scmp.lt.s32.totalorder %s14, 1
      %s167 = scalar_select %p166, %s14, 1
      %s168 = smul.addr %s167, 3
      %s169 = smul.addr %s168, 8
      %s170 = scalar_lea.vmem %s3, %s169
      %v172 = vld [vmem:[%s165] sm:$0xf]
      %v173 = vld [vmem:[%s165 + $0x4] sm:$0xf]
      %v174 = vld [vmem:[%s1] sm:$0xf]
      %v175 = vld [vmem:[%s1 + $0x4] sm:$0xf]
      %v176 = vld [vmem:[%s1 + $0x8] sm:$0xf]
      %v177 = vld [vmem:[%s1 + $0xc] sm:$0xf]
      %v178 = vld [vmem:[%s1 + $0x10] sm:$0xf]
      %v179 = vld [vmem:[%s1 + $0x14] sm:$0xf]
      %v180 = vld [vmem:[%s2] sm:$0x1]
      %181 = vst [vmem:[%s170] sm:$0x1] %v180
      %v182 = vld [vmem:[%s2 + $0x1] sm:$0xff]
      %v183 = vld [vmem:[%s2 + $0x9] sm:$0xff]
      %v186 = vunpack.c.l.b16 %v172
      %v187 = vunpack.c.l.b16 %v173
      %v188 = vpack.c.b16 %v187, %v186
      %v195 = vunpack.c.l.b16 %v174
      %v196 = vunpack.c.l.b16 %v175
      %v197 = vunpack.c.l.b16 %v176
      %v198 = vunpack.c.l.b16 %v177
      %v199 = vunpack.c.l.b16 %v178
      %v200 = vunpack.c.l.b16 %v179
      %v201 = vpack.c.b16 %v196, %v195
      %v202 = vpack.c.b16 %v198, %v197
      %v203 = vpack.c.b16 %v200, %v199
      %vm207 = vcmask 392192
      %v209 = vsel %vm207, %v188, 0
      %211 = vmatprep.subr.bf16.mxu0 0
      %212 = vmatpush1.bf16.msra.mxu0 0
      %213 = vmatprep.subr.bf16.mxu0 0
      %214 = vmatpush1.bf16.msra.mxu0 0
      %215 = vmatprep.subr.bf16.mxu0 0
      %216 = vmatpush1.bf16.msra.mxu0 0
      %217 = vmatprep.subr.bf16.mxu0 0
      %218 = vmatpush1.bf16.msra.mxu0 0
      %219 = vmatprep.subr.bf16.mxu0 0
      %220 = vmatpush1.bf16.msra.mxu0 0
      %221 = vmatprep.subr.bf16.mxu0 0
      %222 = vmatpush1.bf16.msra.mxu0 %v203
      %223 = vmatprep.subr.bf16.mxu0 0
      %224 = vmatpush1.bf16.msra.mxu0 %v202
      %225 = vmatprep.subr.bf16.mxu0 0
      %226 = vmatpush1.bf16.msra.mxu0 %v201
      %227 = vmatprep.subr.bf16.mxu0 0
      %228 = vmatpush2.bf16.msra.mxu0 0
      %229 = vmatprep.subr.bf16.mxu0 0
      %230 = vmatpush2.bf16.msra.mxu0 0
      %231 = vmatprep.subr.bf16.mxu0 0
      %232 = vmatpush2.bf16.msra.mxu0 0
      %233 = vmatprep.subr.bf16.mxu0 0
      %234 = vmatpush2.bf16.msra.mxu0 0
      %235 = vmatprep.subr.bf16.mxu0 0
      %236 = vmatpush2.bf16.msra.mxu0 0
      %237 = vmatprep.subr.bf16.mxu0 0
      %238 = vmatpush2.bf16.msra.mxu0 0
      %239 = vmatprep.subr.bf16.mxu0 0
      %240 = vmatpush2.bf16.msra.mxu0 0
      %241 = vmatprep.subr.bf16.mxu0 0
      %242 = vmatpush2.bf16.msra.mxu0 0
      %243 = vmatprep.mubr.bf16.mxu0 0
      %244 = vmatmul.mubr.bf16.gmra.mxu0 %v209
      %v245 = vpop.f32.mrf.mxu0
      %v246 = vadd.f32 %v182, %v245
      %v247 = vpop.f32.mrf.mxu0
      %v248 = vpop.f32.mrf.mxu0
      %v249 = vadd.f32 %v183, %v248
      %v250 = vpop.f32.mrf.mxu0
      %251 = vdwg.mxu0
      %252 = vst [vmem:[%s170 + $0x1] sm:$0xff] %v246
      %253 = vst [vmem:[%s170 + $0x9] sm:$0xff] %v249
      %p254 = scmp.lt.s32.totalorder %s14, 1
      %s255 = scalar_select %p254, %s14, 1
      %s256 = smul.addr %s255, 3
      %s257 = smul.addr %s256, 8
      %s258 = scalar_lea.vmem %s3, %s257
      // Predicated region
      $region33: #{vit_patch_encoder_forward.1} parent=31 // pred_check
        %p259 = pneg %p100
      $region34: #{vit_patch_encoder_forward.1} parent=31 // pred_check_branch
        %261 = sbr.rel (%p259) target = $region36
      $region35: #{vit_patch_encoder_forward.1} parent=31 // pred_region
        _
      $region36: #{vit_patch_encoder_forward.1} parent=31 // pred_fallthru
        _
    $region32: #{vit_patch_encoder_forward.1} parent=5 // pred_fallthru
      _
    %p262 = scmp.le.s32.totalorder 2, %s9
    // Predicated region
    $region37: #{vit_patch_encoder_forward.1} parent=5 // pred_check
      %p263 = pneg %p262
    $region38: #{vit_patch_encoder_forward.1} parent=5 // pred_check_branch
      %265 = sbr.rel (%p263) target = $region40
    $region39: #{vit_patch_encoder_forward.1} parent=5 // pred_region
      %s266 = ssub.s32 %s9, 2
      // Predicated region
      $region41: #{vit_patch_encoder_forward.1} parent=39 // pred_check
        %p267 = pneg %p106
      $region42: #{vit_patch_encoder_forward.1} parent=39 // pred_check_branch
        %269 = sbr.rel (%p267) target = $region44
      $region43: #{vit_patch_encoder_forward.1} parent=39 // pred_region
        %p270 = scmp.lt.s32.totalorder %s15, 1
        %s271 = scalar_select %p270, %s15, 1
        %s272 = smul.addr %s271, 3
        %s273 = smul.addr %s272, 8
        %s274 = scalar_lea.vmem %s3, %s273
      $region44: #{vit_patch_encoder_forward.1} parent=39 // pred_fallthru
        _
    $region40: #{vit_patch_encoder_forward.1} parent=5 // pred_fallthru
      _
  $region6: #{vit_patch_encoder_forward.1} parent=0 // loop_footer
    %s13 = sadd.s32 1, %s9
  $region7: #{vit_patch_encoder_forward.1} parent=0 // loop_footer_branch
    %8 = sbr.rel target = $region3
  $region8: #{vit_patch_encoder_forward.1} parent=0 // loop_exit
    _

</llo_original>
